<compile_context>
chip_gen: v5e
topology: v5e:2x2
jax: 0.10.0
libtpu: 0.0.40
codegen_flags: <defaults>
</compile_context>

<pallas_src>
import jax
import jax.numpy as jnp
from jax.experimental import pallas as pl
from jax.experimental.pallas import tpu as pltpu


# ---------------------------------------------------------------------------
# Kernels
# ---------------------------------------------------------------------------
def _softmax_weighted_sum(states_ref, scores_f32, ctx_ref, w_ref):
    """scores_f32: (bb, T, 1) float32, already masked if a mask was given."""
    # Numerically stable softmax over the sequence axis (axis=1).
    m = jnp.max(scores_f32, axis=1, keepdims=True)            # (bb, 1, 1)
    e = jnp.exp(scores_f32 - m)                                # (bb, T, 1)
    denom = jnp.sum(e, axis=1, keepdims=True)                  # (bb, 1, 1)
    w = e / denom                                              # (bb, T, 1)
    w_ref[...] = w.astype(w_ref.dtype)

    # final_context = (states * weights).sum(dim=1)
    states = states_ref[...].astype(jnp.float32)               # (bb, T, H)
    ctx_ref[...] = jnp.sum(states * w, axis=1).astype(ctx_ref.dtype)


def _apply_attention_kernel(states_ref, scores_ref, ctx_ref, w_ref):
    _softmax_weighted_sum(
        states_ref, scores_ref[...].astype(jnp.float32), ctx_ref, w_ref
    )


def _apply_attention_masked_kernel(states_ref, scores_ref, mask_ref,
                                   ctx_ref, w_ref):
    s = scores_ref[...].astype(jnp.float32)
    s = jnp.where(mask_ref[...] != 0, s, jnp.float32(-1000.0))
    _softmax_weighted_sum(states_ref, s, ctx_ref, w_ref)


# ---------------------------------------------------------------------------
# Wrapper
# ---------------------------------------------------------------------------
def apply_attention(states, attention_scores, mask=None):
    B, T, H = states.shape
    # Accept (B, T) or (B, T, 1) scores; reshape is metadata-only (no kernel).
    scores3 = jnp.reshape(attention_scores, (B, T, 1))

    # Batch-tile selection: biggest tile that keeps a block ~2 MiB (safe under
    # v7x's 32 MiB scoped-VMEM default with double buffering), multiple of 8
    # when the batch axis actually gets tiled (sublane granule for the (bb, H)
    # context output block).
    itemsize = states.dtype.itemsize
    per_batch_bytes = T * H * itemsize + T * (scores3.dtype.itemsize + 8) + H * itemsize
    target_bytes = 2 << 20
    if B * per_batch_bytes <= target_bytes:
        bb = B
    else:
        bb = min(B, max(8, (target_bytes // per_batch_bytes) // 8 * 8))
    grid = (pl.cdiv(B, bb),)

    in_specs = [
        pl.BlockSpec((bb, T, H), lambda i: (i, 0, 0)),   # states
        pl.BlockSpec((bb, T, 1), lambda i: (i, 0, 0)),   # scores
    ]
    args = [states, scores3]
    kernel = _apply_attention_kernel
    mask_bytes = 0
    if mask is not None:
        mask3 = jnp.reshape(mask, (B, T, 1)).astype(jnp.int32)
        in_specs.append(pl.BlockSpec((bb, T, 1), lambda i: (i, 0, 0)))
        args.append(mask3)
        kernel = _apply_attention_masked_kernel
        mask_bytes = B * T * 4

    bytes_accessed = (
        B * T * H * itemsize                       # states read
        + B * T * scores3.dtype.itemsize           # scores read
        + mask_bytes                               # optional mask read
        + B * H * itemsize                         # context write
        + B * T * scores3.dtype.itemsize           # weights write
    )
    cost = pl.CostEstimate(
        flops=2 * B * T * H + 6 * B * T,
        transcendentals=B * T,
        bytes_accessed=int(bytes_accessed),
    )

    ctx, w = pl.pallas_call(
        kernel,
        out_shape=(
            jax.ShapeDtypeStruct((B, H), states.dtype),
            jax.ShapeDtypeStruct((B, T, 1), scores3.dtype),
        ),
        grid_spec=pltpu.PrefetchScalarGridSpec(
            num_scalar_prefetch=0,
            grid=grid,
            in_specs=in_specs,
            out_specs=(
                pl.BlockSpec((bb, H), lambda i: (i, 0)),
                pl.BlockSpec((bb, T, 1), lambda i: (i, 0, 0)),
            ),
        ),
        compiler_params=pltpu.CompilerParams(
            dimension_semantics=("parallel",)
        ),
        cost_estimate=cost,
    )(*args)

    # torch returns weights with the shape of attention_scores.
    weights = jnp.reshape(w, attention_scores.shape)
    return ctx, weights


class ApplyAttention:
    """JAX/Pallas equivalent of the PyTorch `ApplyAttention` module."""

    def __call__(self, states, attention_scores, mask=None):
        return apply_attention(states, attention_scores, mask)


# ---------------------------------------------------------------------------
# Self-test
# ---------------------------------------------------------------------------
if __name__ == "__main__":
    key = jax.random.PRNGKey(0)
    B, T, H = 2, 8, 32
    k1, k2 = jax.random.split(key)
    states = jax.random.normal(k1, (B, T, H), dtype=jnp.float32)
    scores = jax.random.normal(k2, (B, T, 1), dtype=jnp.float32)
    lengths = jnp.array([6, 8], dtype=jnp.int32)
    mask = (jnp.arange(T, dtype=jnp.int32)[None, :] < lengths[:, None])[:, :, None]

    mod = ApplyAttention()

    ctx_m, w_m = mod(states, scores, mask)      # masked path
    ctx_u, w_u = mod(states, scores)            # unmasked path
    jax.block_until_ready((ctx_m, w_m, ctx_u, w_u))

    # Pure-JAX references mirroring the torch forward.
    s_masked = jnp.where(mask, scores, jnp.float32(-1000.0))
    w_ref_m = jax.nn.softmax(s_masked, axis=1)
    ctx_ref_m = jnp.sum(states * w_ref_m, axis=1)
    w_ref_u = jax.nn.softmax(scores, axis=1)
    ctx_ref_u = jnp.sum(states * w_ref_u, axis=1)

    assert ctx_m.shape == (B, H) and w_m.shape == scores.shape
    assert ctx_u.shape == (B, H) and w_u.shape == scores.shape
    assert bool(jnp.allclose(w_m, w_ref_m, atol=1e-6, rtol=1e-5)), "masked weights mismatch"
    assert bool(jnp.allclose(ctx_m, ctx_ref_m, atol=1e-5, rtol=1e-5)), "masked context mismatch"
    assert bool(jnp.allclose(w_u, w_ref_u, atol=1e-6, rtol=1e-5)), "weights mismatch"
    assert bool(jnp.allclose(ctx_u, ctx_ref_u, atol=1e-5, rtol=1e-5)), "context mismatch"

    print("KERNEL_OK")
</pallas_src>

<mosaic_0001>
module attributes {stable_mosaic.version = 11 : i64} {
  func.func @_apply_attention_masked_kernel(%arg0: i32, %arg1: memref<2x8x32xf32, #tpu.memory_space<vmem>>, %arg2: memref<2x8x1xf32, #tpu.memory_space<vmem>>, %arg3: memref<2x8x1xi32, #tpu.memory_space<vmem>>, %arg4: memref<2x32xf32, #tpu.memory_space<vmem>>, %arg5: memref<2x8x1xf32, #tpu.memory_space<vmem>>) attributes {dimension_semantics = [#tpu.dimension_semantics<parallel>], iteration_bounds = array<i64: 1>, scalar_prefetch = 0 : i64, scratch_operands = 0 : i64, tpu.core_type = #tpu.core_type<tc>, window_params = [{transform_indices = @transform_0, window_bounds = array<i64: 2, 8, 32>}, {transform_indices = @transform_1, window_bounds = array<i64: 2, 8, 1>}, {transform_indices = @transform_2, window_bounds = array<i64: 2, 8, 1>}, {transform_indices = @transform_3, window_bounds = array<i64: 2, 32>}, {transform_indices = @transform_4, window_bounds = array<i64: 2, 8, 1>}]} {
    %c0 = arith.constant 0 : index
    %c0_0 = arith.constant 0 : index
    %c0_1 = arith.constant 0 : index
    %0 = vector.load %arg2[%c0, %c0_0, %c0_1] : memref<2x8x1xf32, #tpu.memory_space<vmem>>, vector<2x8x1xf32>
    %c0_2 = arith.constant 0 : index
    %c0_3 = arith.constant 0 : index
    %c0_4 = arith.constant 0 : index
    %1 = vector.load %arg3[%c0_2, %c0_3, %c0_4] : memref<2x8x1xi32, #tpu.memory_space<vmem>>, vector<2x8x1xi32>
    %c0_i32 = arith.constant 0 : i32
    %2 = vector.broadcast %c0_i32 : i32 to vector<2x8x1xi32>
    %3 = arith.cmpi ne, %1, %2 : vector<2x8x1xi32>
    %cst = arith.constant -1.000000e+03 : f32
    %4 = vector.broadcast %cst : f32 to vector<2x8x1xf32>
    %5 = arith.select %3, %0, %4 : vector<2x8x1xi1>, vector<2x8x1xf32>
    %cst_5 = arith.constant dense<0xFF800000> : vector<2x1xf32>
    %6 = vector.multi_reduction <maximumf>, %5, %cst_5 [1] : vector<2x8x1xf32> to vector<2x1xf32>
    %7 = vector.shape_cast %6 : vector<2x1xf32> to vector<2x1x1xf32>
    %8 = vector.broadcast %7 : vector<2x1x1xf32> to vector<2x8x1xf32>
    %9 = arith.subf %5, %8 : vector<2x8x1xf32>
    %10 = math.exp %9 : vector<2x8x1xf32>
    %cst_6 = arith.constant dense<0.000000e+00> : vector<2x1xf32>
    %11 = vector.multi_reduction <add>, %10, %cst_6 [1] : vector<2x8x1xf32> to vector<2x1xf32>
    %12 = vector.shape_cast %11 : vector<2x1xf32> to vector<2x1x1xf32>
    %13 = vector.broadcast %12 : vector<2x1x1xf32> to vector<2x8x1xf32>
    %14 = arith.divf %10, %13 : vector<2x8x1xf32>
    %c0_7 = arith.constant 0 : index
    %c0_8 = arith.constant 0 : index
    %c0_9 = arith.constant 0 : index
    %15 = vector.load %arg5[%c0_7, %c0_8, %c0_9] : memref<2x8x1xf32, #tpu.memory_space<vmem>>, vector<2x8x1xf32>
    tpu.vector_store %arg5[%c0_7, %c0_8, %c0_9], %14 {strides = array<i32>} : memref<2x8x1xf32, #tpu.memory_space<vmem>>, vector<2x8x1xf32>,
    %c0_10 = arith.constant 0 : index
    %c0_11 = arith.constant 0 : index
    %c0_12 = arith.constant 0 : index
    %16 = vector.load %arg1[%c0_10, %c0_11, %c0_12] : memref<2x8x32xf32, #tpu.memory_space<vmem>>, vector<2x8x32xf32>
    %17 = vector.broadcast %14 : vector<2x8x1xf32> to vector<2x8x32xf32>
    %18 = arith.mulf %16, %17 : vector<2x8x32xf32>
    %cst_13 = arith.constant dense<0.000000e+00> : vector<2x32xf32>
    %19 = vector.multi_reduction <add>, %18, %cst_13 [1] : vector<2x8x32xf32> to vector<2x32xf32>
    %c0_14 = arith.constant 0 : index
    %c0_15 = arith.constant 0 : index
    %20 = vector.load %arg4[%c0_14, %c0_15] : memref<2x32xf32, #tpu.memory_space<vmem>>, vector<2x32xf32>
    tpu.vector_store %arg4[%c0_14, %c0_15], %19 {strides = array<i32>} : memref<2x32xf32, #tpu.memory_space<vmem>>, vector<2x32xf32>,
    return
  }
  func.func @transform_0(%arg0: i32) -> (i32, i32, i32) {
    %c0_i32 = arith.constant 0 : i32
    %c0_i32_0 = arith.constant 0 : i32
    %c0_i32_1 = arith.constant 0 : i32
    return %arg0, %c0_i32, %c0_i32_0 : i32, i32, i32
  }
  func.func @transform_1(%arg0: i32) -> (i32, i32, i32) {
    %c0_i32 = arith.constant 0 : i32
    %c0_i32_0 = arith.constant 0 : i32
    %c0_i32_1 = arith.constant 0 : i32
    return %arg0, %c0_i32, %c0_i32_0 : i32, i32, i32
  }
  func.func @transform_2(%arg0: i32) -> (i32, i32, i32) {
    %c0_i32 = arith.constant 0 : i32
    %c0_i32_0 = arith.constant 0 : i32
    %c0_i32_1 = arith.constant 0 : i32
    return %arg0, %c0_i32, %c0_i32_0 : i32, i32, i32
  }
  func.func @transform_3(%arg0: i32) -> (i32, i32) {
    %c0_i32 = arith.constant 0 : i32
    %c0_i32_0 = arith.constant 0 : i32
    return %arg0, %c0_i32 : i32, i32
  }
  func.func @transform_4(%arg0: i32) -> (i32, i32, i32) {
    %c0_i32 = arith.constant 0 : i32
    %c0_i32_0 = arith.constant 0 : i32
    %c0_i32_1 = arith.constant 0 : i32
    return %arg0, %c0_i32, %c0_i32_0 : i32, i32, i32
  }
}

</mosaic_0001>

<llo_original>
// kernel: tpu_custom_call.1
$region0: #{tpu_custom_call.1}
  #allocation0 [shape = 'u32[]', space=smem, size = 0x4, offset = 0x4, fixed_abs, tag = 'smem constant byte address 0x4 - core index']
  #allocation1 [shape = 'u32[72,128]{1,0:T(1,128)}', space=vmem, size = 0x9000, scoped, tag = 'internal scratch']
  %s0 = inlined_call_operand.vmem [shape: f32[2,8,32], index: 0, kind: input, shape index: {}]
  %s1 = inlined_call_operand.vmem [shape: f32[2,8,1], index: 1, kind: input, shape index: {}]
  %s2 = inlined_call_operand.vmem [shape: s32[2,8,1], index: 2, kind: input, shape index: {}]
  %s3 = inlined_call_operand.hbm [shape: f32[2,32], index: 3, kind: output, shape index: {0}]
  %s4 = inlined_call_operand.vmem [shape: f32[2,8,1], index: 4, kind: output, shape index: {1}]
  %5 = xla_tuple %s3, %s4
  %s6 = sld [smem:[#allocation0]]
  $region30: #{tpu_custom_call.1} parent=0
    _
  %s8 = ssub.s32 1, %s6
  %s9 = scalar_select 0, %s8, %s6
  $region1: #{tpu_custom_call.1} parent=0
    #allocation2 [shape = 'u8[1024]{0}', space=vmem, size = 0x400, scoped, tag = 'output window, operand 0, single buffered']
    #allocation3 [shape = 's32[1]{0}', space=sflag, size = 0x4, scoped, tag = 'scoped memory for tpu_custom_call.1']
    %10 = vsyncpa [#allocation3], 0
    // Predicated region
    $region2: #{tpu_custom_call.1} parent=1 // pred_check
      _
    $region3: #{tpu_custom_call.1} parent=1 // pred_check_branch
      %12 = sbr.rel (0) target = $region5
    $region4: #{tpu_custom_call.1} parent=1 // pred_region
      _
    $region5: #{tpu_custom_call.1} parent=1 // pred_fallthru
      _
    // Predicated region
    $region6: #{tpu_custom_call.1} parent=1 // pred_check
      _
    $region7: #{tpu_custom_call.1} parent=1 // pred_check_branch
      %14 = sbr.rel (0) target = $region9
    $region8: #{tpu_custom_call.1} parent=1 // pred_region
      _
    $region9: #{tpu_custom_call.1} parent=1 // pred_fallthru
      _
    // Predicated region
    $region10: #{tpu_custom_call.1} parent=1 // pred_check
      _
    $region11: #{tpu_custom_call.1} parent=1 // pred_check_branch
      %16 = sbr.rel (0) target = $region13
    $region12: #{tpu_custom_call.1} parent=1 // pred_region
      _
    $region13: #{tpu_custom_call.1} parent=1 // pred_fallthru
      _
    %v17 = vld [vmem:[%s1] sm:$0xff]
    %v18 = vld [vmem:[%s1 + $0x8] sm:$0xff]
    %v19 = vld [vmem:[%s2] sm:$0xff]
    %v20 = vld [vmem:[%s2 + $0x8] sm:$0xff]
    %vm21 = vcmp.ne.s32.totalorder %v19, 0
    %vm22 = vcmp.ne.s32.totalorder %v20, 0
    %v23 = vsel %vm21, %v17, -1000.0
    %v24 = vsel %vm22, %v18, -1000.0
    %vm25 = vcmask 7168
    %v26 = vsel %vm25, %v23, -inf
    %v27 = vrot.slane %v26, 4
    %v28 = vmax.f32 %v26, %v27
    %v29 = vrot.slane %v28, 2
    %v30 = vmax.f32 %v28, %v29
    %v31 = vrot.slane %v30, 1
    %v32 = vmax.f32 %v30, %v31
    %v33 = vsel %vm25, %v24, -inf
    %v34 = vrot.slane %v33, 4
    %v35 = vmax.f32 %v33, %v34
    %v36 = vrot.slane %v35, 2
    %v37 = vmax.f32 %v35, %v36
    %v38 = vrot.slane %v37, 1
    %v39 = vmax.f32 %v37, %v38
    %v40 = vsub.f32 %v23, %v32
    %v41 = vsub.f32 %v24, %v39
    %v42 = vmul.f32 %v40, 1.442695
    %v43 = vpow.pop %v42
    %v44 = vmul.f32 %v41, 1.442695
    %v45 = vpow.pop %v44
    %v46 = vsel %vm25, %v43, 0.0
    %v47 = vrot.slane %v46, 4
    %v48 = vadd.f32 %v46, %v47
    %v49 = vrot.slane %v48, 2
    %v50 = vadd.f32 %v48, %v49
    %v51 = vrot.slane %v50, 1
    %v52 = vadd.f32 %v50, %v51
    %v53 = vsel %vm25, %v45, 0.0
    %v54 = vrot.slane %v53, 4
    %v55 = vadd.f32 %v53, %v54
    %v56 = vrot.slane %v55, 2
    %v57 = vadd.f32 %v55, %v56
    %v58 = vrot.slane %v57, 1
    %v59 = vadd.f32 %v57, %v58
    %v60 = vrcp.pop %v52
    %v61 = vmul.f32 %v52, %v60
    %v62 = vsub.f32 1.0, %v61
    %v63 = vmul.f32 %v60, %v62
    %v64 = vadd.f32 %v60, %v63
    %vm65 = vweird.f32 %v52
    %vm66 = vweird.f32 %v60
    %vm67 = vmor %vm65, %vm66
    %v68 = vsel %vm67, %v60, %v64
    %v69 = vand.u32 2147483647, %v52
    %vm70 = vcmp.eq.f32.partialorder %v69, 8.507059e+37
    %v71 = vand.u32 %v52, 2147483648
    %v72 = vor.u32 1.1754944e-38, %v71
    %v73 = vsel %vm70, %v72, %v68
    %v74 = vmul.f32 %v43, %v73
    %v75 = vrcp.pop %v59
    %v76 = vmul.f32 %v59, %v75
    %v77 = vsub.f32 1.0, %v76
    %v78 = vmul.f32 %v75, %v77
    %v79 = vadd.f32 %v75, %v78
    %vm80 = vweird.f32 %v59
    %vm81 = vweird.f32 %v75
    %vm82 = vmor %vm80, %vm81
    %v83 = vsel %vm82, %v75, %v79
    %v84 = vand.u32 2147483647, %v59
    %vm85 = vcmp.eq.f32.partialorder %v84, 8.507059e+37
    %v86 = vand.u32 %v59, 2147483648
    %v87 = vor.u32 1.1754944e-38, %v86
    %v88 = vsel %vm85, %v87, %v83
    %v89 = vmul.f32 %v45, %v88
    %90 = vst.msk [vmem:[%s4] sm:$0xff] %vm25, %v74
    %91 = vst.msk [vmem:[%s4 + $0x8] sm:$0xff] %vm25, %v89
    %v92 = vld [vmem:[%s0] sm:$0xff]
    %v93 = vld [vmem:[%s0 + $0x8] sm:$0xff]
    %95 = vset.pattern.permute.xlu0 0
    %96 = vperm.xlu0 %95, %v74
    %v97 = vpop.permute.xlu0 %96
    %100 = vset.pattern.permute.xlu0 0
    %101 = vperm.xlu0 %100, %v89
    %v102 = vpop.permute.xlu0 %101
    %v104 = vmul.f32 %v92, %v97
    %v105 = vmul.f32 %v93, %v102
    %vm106 = vcmask 261120
    %v107 = vsel %vm106, %v104, 0.0
    %v108 = vrot.slane %v107, 4
    %v109 = vadd.f32 %v107, %v108
    %v110 = vrot.slane %v109, 2
    %v111 = vadd.f32 %v109, %v110
    %v112 = vrot.slane %v111, 1
    %v113 = vadd.f32 %v111, %v112
    %v114 = vsel %vm106, %v105, 0.0
    %v115 = vrot.slane %v114, 4
    %v116 = vadd.f32 %v114, %v115
    %v117 = vrot.slane %v116, 2
    %v118 = vadd.f32 %v116, %v117
    %v119 = vrot.slane %v118, 1
    %v120 = vadd.f32 %v118, %v119
    %vm123 = vcmask 1041409
    %v124 = vsel %vm123, %v120, %v113
    %vm126 = vcmask 254976
    %127 = vst.msk [vmem:[#allocation2] sm:$0x3] %vm126, %v124
    // Predicated region
    $region14: #{tpu_custom_call.1} parent=1 // pred_check
      _
    $region15: #{tpu_custom_call.1} parent=1 // pred_check_branch
      %129 = sbr.rel (0) target = $region17
    $region16: #{tpu_custom_call.1} parent=1 // pred_region
      %131 = vsyncadd [#allocation3], 0
      %s133 = sshll.u32 [#allocation2], 4
      %s134 = int_to_ptr.vmem [resolvable:$true] %s133
      %s135 = sshll.u32 %s3, 4
      %s136 = int_to_ptr.hbm [resolvable:$true] %s135
      %138 = dma.vmem_to_hbm [thread:$0]  %s134, 32, %s136, [#allocation3]
    $region17: #{tpu_custom_call.1} parent=1 // pred_fallthru
      _
    // Predicated region
    $region18: #{tpu_custom_call.1} parent=1 // pred_check
      _
    $region19: #{tpu_custom_call.1} parent=1 // pred_check_branch
      %140 = sbr.rel (0) target = $region21
    $region20: #{tpu_custom_call.1} parent=1 // pred_region
      _
    $region21: #{tpu_custom_call.1} parent=1 // pred_fallthru
      _
    // Predicated region
    $region22: #{tpu_custom_call.1} parent=1 // pred_check
      _
    $region23: #{tpu_custom_call.1} parent=1 // pred_check_branch
      %142 = sbr.rel (0) target = $region25
    $region24: #{tpu_custom_call.1} parent=1 // pred_region
      %144 = dma.done [#allocation3], 32
    $region25: #{tpu_custom_call.1} parent=1 // pred_fallthru
      _
    // Predicated region
    $region26: #{tpu_custom_call.1} parent=1 // pred_check
      _
    $region27: #{tpu_custom_call.1} parent=1 // pred_check_branch
      %146 = sbr.rel (0) target = $region29
    $region28: #{tpu_custom_call.1} parent=1 // pred_region
      _
    $region29: #{tpu_custom_call.1} parent=1 // pred_fallthru
      _
    %147 = vsyncpa [#allocation3], 1

</llo_original>
